<compile_context>
chip_gen: v7x
topology: tpu7x:2x2x1
jax: 0.10.0
libtpu: 0.0.40
codegen_flags: <defaults>
</compile_context>

<pallas_src>
import functools

import jax
import jax.numpy as jnp
from jax.experimental import pallas as pl
from jax.experimental.pallas import tpu as pltpu

_LN_EPS = 1e-6


# ---------------------------------------------------------------------------
# Fused kernel: patch-embed matmul + pos/bias add + layernorm + cls/GAP head
# ---------------------------------------------------------------------------
def fused_dino_kernel(
    patches_ref,   # (1, TN, K)   bf16  flattened patch pixels for this row tile
    w_ref,         # (K, D)       bf16  full patch-embedding weight (VMEM-resident)
    pos_ref,       # (TN, D)      f32   pos-emb (+ conv bias folded) row tile
    consts_ref,    # (8, D)       f32   row0: cls+pos, row1: gamma, row2: beta
    out_ref,       # (1, 1, OUT)  f32   normalized features for this batch elt
    gap_ref,       # (1, D)       f32   running GAP sum (scratch, carried over n)
    *, n_patches, mode,
):
    n = pl.program_id(1)
    last_n = pl.num_programs(1) - 1

    gamma = consts_ref[1:2, :]
    beta = consts_ref[2:3, :]

    @pl.when(n == 0)
    def _():
        gap_ref[...] = jnp.zeros_like(gap_ref)

    # Patch embedding: Conv2d(stride=kernel) as one MXU matmul, f32 accumulate,
    # then the positional embedding (conv bias folded in offline).
    h = jnp.dot(patches_ref[0], w_ref[...],
                preferred_element_type=jnp.float32)          # (TN, D) f32
    h = h + pos_ref[...]

    d = h.shape[-1]
    inv_d = 1.0 / d

    # Backbone-final layernorm, single pass (sum + sum-of-squares).
    s1 = jnp.sum(h, axis=-1, keepdims=True)
    s2 = jnp.sum(h * h, axis=-1, keepdims=True)
    mu = s1 * inv_d
    var = s2 * inv_d - mu * mu
    hn = (h - mu) * jax.lax.rsqrt(var + _LN_EPS)
    hn = hn * gamma + beta

    if mode == "cls+gap":
        gap_ref[...] += jnp.sum(hn, axis=0, keepdims=True)

    @pl.when(n == last_n)
    def _():
        # cls-token path (layernorm of cls + pos[0]) and the wrapper head.
        c = consts_ref[0:1, :]                               # (1, D)
        cs1 = jnp.sum(c, axis=-1, keepdims=True)
        cs2 = jnp.sum(c * c, axis=-1, keepdims=True)
        cmu = cs1 * inv_d
        cvar = cs2 * inv_d - cmu * cmu
        cn = (c - cmu) * jax.lax.rsqrt(cvar + _LN_EPS)
        cn = cn * gamma + beta                               # (1, D)

        if mode == "cls":
            ss = jnp.sum(cn * cn, axis=-1, keepdims=True)    # (1, 1)
            inv = jax.lax.rsqrt(jnp.maximum(ss, 1e-24))      # == 1/max(||x||,1e-12)
            out_ref[...] = (cn * inv)[:, None, :]
        else:  # "cls+gap"
            gap = gap_ref[...] * (1.0 / n_patches)           # (1, D)
            ss = (jnp.sum(cn * cn, axis=-1, keepdims=True)
                  + jnp.sum(gap * gap, axis=-1, keepdims=True))
            inv = jax.lax.rsqrt(jnp.maximum(ss, 1e-24))
            # "concat" via two disjoint, 128-aligned lane stores (no shuffle).
            out_ref[:, :, 0:d] = (cn * inv)[:, None, :]
            out_ref[:, :, d:2 * d] = (gap * inv)[:, None, :]


# ---------------------------------------------------------------------------
# Wrapper module (parameters + glue)
# ---------------------------------------------------------------------------
class DinoV2WrapperPallas:
    def __init__(self, key, *, channels=3, image_size=32, patch=8, hidden=128,
                 mode="cls+gap", row_tile=None):
        assert image_size % patch == 0
        assert mode in ("cls", "cls+gap")
        # D must be lane-aligned (real DinoV2 D=768 already is).
        # TODO(synk): D not a multiple of 128 would need a masked layernorm.
        assert hidden % 128 == 0, "hidden must be a multiple of 128"

        self.C, self.H, self.P, self.D = channels, image_size, patch, hidden
        self.N = (image_size // patch) ** 2
        self.S = self.N + 1
        self.mode = mode
        self.K = channels * patch * patch

        # Big row tiles: whole image's patches in one MXU matmul when possible.
        if row_tile is None:
            row_tile = min(self.N, 256)
        self.row_tile = row_tile
        # TODO(synk): ragged row tiles (N % row_tile != 0) would need masking.
        assert self.N % row_tile == 0
        assert row_tile == self.N or row_tile % 16 == 0  # bf16 sublane packing

        k = jax.random.split(key, 5)
        # logical (unpadded, f32) parameters — used by the pure-JAX reference
        self.w_patch = (jax.random.normal(k[0], (self.K, hidden), jnp.float32)
                        * (1.0 / jnp.sqrt(self.K)))
        self.b_patch = jax.random.normal(k[1], (1, hidden), jnp.float32) * 0.01
        self.cls_token = jax.random.normal(k[2], (1, 1, hidden), jnp.float32) * 0.02
        self.pos_emb = jax.random.normal(k[3], (1, self.S, hidden), jnp.float32) * 0.02
        self.ln_gamma = jnp.ones((1, 1, hidden), jnp.float32)
        self.ln_beta = jnp.zeros((1, 1, hidden), jnp.float32)

        # kernel-side parameters: bf16 weight (unpadded K, VMEM-resident), conv
        # bias folded into the positional embedding, cls + its pos-emb folded,
        # (cls, gamma, beta) packed into a single (8, D) constants block.
        self.w_bf16 = self.w_patch.astype(jnp.bfloat16)                  # [K, D]
        self.pos_patch = self.pos_emb[0, 1:, :] + self.b_patch           # [N, D]
        cls_embed = self.cls_token[0] + self.pos_emb[0, 0:1, :]          # [1, D]
        consts = jnp.zeros((8, hidden), jnp.float32)
        consts = consts.at[0:1].set(cls_embed)
        consts = consts.at[1:2].set(self.ln_gamma.reshape(1, hidden))
        consts = consts.at[2:3].set(self.ln_beta.reshape(1, hidden))
        self.consts = consts

    # -- glue: NCHW image -> patch rows with K on the contiguous lane axis --
    def _patchify(self, x):
        B, C, H, W = x.shape
        P = self.P
        x = x.reshape(B, C, H // P, P, W // P, P)
        x = jnp.transpose(x, (0, 2, 4, 1, 3, 5))          # [B, Hp, Wp, C, P, P]
        return x.reshape(B, self.N, C * P * P)            # [B, N, K]

    def __call__(self, x):
        B = x.shape[0]
        rows = self._patchify(x.astype(jnp.float32)).astype(jnp.bfloat16)  # [B,N,K]

        out_dim = self.D if self.mode == "cls" else 2 * self.D
        TN, K, D = self.row_tile, self.K, self.D
        grid = (B, self.N // TN)

        # Rough VMEM budget (double-buffered streamed tiles + resident weight),
        # clamped with headroom for v7x's smaller (64 MiB) physical VMEM.
        vmem_est = (2 * (TN * K * 2 + TN * D * 4)      # patches + pos tiles
                    + K * D * 2 + 8 * D * 4            # resident weight + consts
                    + 2 * out_dim * 4 + D * 4)         # out + gap scratch
        vmem_limit = int(min(max(2 * vmem_est, 16 << 20), 28 << 20))

        kern = functools.partial(fused_dino_kernel,
                                 n_patches=self.N, mode=self.mode)
        out = pl.pallas_call(
            kern,
            out_shape=jax.ShapeDtypeStruct((B, 1, out_dim), jnp.float32),
            grid_spec=pltpu.PrefetchScalarGridSpec(
                num_scalar_prefetch=0,
                grid=grid,
                in_specs=[
                    # streamed per grid step
                    pl.BlockSpec((1, TN, K), lambda b, n: (b, n, 0)),   # patches
                    # constant block index -> fetched once, stays VMEM-resident
                    pl.BlockSpec((K, D), lambda b, n: (0, 0)),          # weight
                    pl.BlockSpec((TN, D), lambda b, n: (n, 0)),         # pos+bias
                    pl.BlockSpec((8, D), lambda b, n: (0, 0)),          # cls/γ/β
                ],
                out_specs=pl.BlockSpec((1, 1, out_dim), lambda b, n: (b, 0, 0)),
                scratch_shapes=[
                    pltpu.VMEM((1, D), jnp.float32),    # GAP running sum
                ],
            ),
            compiler_params=pltpu.CompilerParams(
                dimension_semantics=("parallel", "arbitrary"),
                vmem_limit_bytes=vmem_limit,
            ),
        )(rows, self.w_bf16, self.pos_patch, self.consts)
        return out.reshape(B, out_dim)


# ---------------------------------------------------------------------------
# Pure-JAX reference (same math, full f32) for a sanity check.
# ---------------------------------------------------------------------------
def reference_forward(m: DinoV2WrapperPallas, x):
    B = x.shape[0]
    patches = m._patchify(x.astype(jnp.float32)).reshape(B * m.N, m.K)
    pe = (patches @ m.w_patch + m.b_patch).reshape(B, m.N, m.D)
    cls = jnp.broadcast_to(m.cls_token, (B, 1, m.D))
    h = jnp.concatenate([cls, pe], axis=1) + m.pos_emb
    mu = h.mean(-1, keepdims=True)
    var = ((h - mu) ** 2).mean(-1, keepdims=True)
    h = (h - mu) * jax.lax.rsqrt(var + _LN_EPS) * m.ln_gamma + m.ln_beta
    cls_tok = h[:, 0]
    if m.mode == "cls":
        feat = cls_tok
    else:
        feat = jnp.concatenate([cls_tok, h[:, 1:].mean(1)], axis=-1)
    nrm = jnp.sqrt((feat * feat).sum(-1, keepdims=True))
    return feat / jnp.maximum(nrm, 1e-12)


if __name__ == "__main__":
    key = jax.random.PRNGKey(0)
    k_param, k_x = jax.random.split(key)

    B, C, H, W = 2, 3, 32, 32
    x = jax.random.normal(k_x, (B, C, H, W), jnp.float32)

    # 'cls+gap' mode (default wrapper behaviour)
    model = DinoV2WrapperPallas(k_param, channels=C, image_size=H, patch=8,
                                hidden=128, mode="cls+gap")
    out = jax.block_until_ready(model(x))
    ref = reference_forward(model, x)
    assert out.shape == (B, 2 * model.D)
    # lenient tolerance: kernel matmul runs in bf16 with f32 accumulation
    assert jnp.allclose(out, ref, rtol=2e-2, atol=2e-2), \
        float(jnp.max(jnp.abs(out - ref)))

    # 'cls' mode
    model_cls = DinoV2WrapperPallas(k_param, channels=C, image_size=H, patch=8,
                                    hidden=128, mode="cls")
    out_cls = jax.block_until_ready(model_cls(x))
    ref_cls = reference_forward(model_cls, x)
    assert out_cls.shape == (B, model_cls.D)
    assert jnp.allclose(out_cls, ref_cls, rtol=2e-2, atol=2e-2), \
        float(jnp.max(jnp.abs(out_cls - ref_cls)))

    print("KERNEL_OK")
</pallas_src>

<mosaic_0001>
module attributes {stable_mosaic.version = 11 : i64} {
  func.func @fused_dino_kernel(%arg0: i32, %arg1: i32, %arg2: memref<1x16x192xbf16, #tpu.memory_space<vmem>>, %arg3: memref<192x128xbf16, #tpu.memory_space<vmem>>, %arg4: memref<16x128xf32, #tpu.memory_space<vmem>>, %arg5: memref<8x128xf32, #tpu.memory_space<vmem>>, %arg6: memref<1x1x256xf32, #tpu.memory_space<vmem>>, %arg7: memref<1x128xf32, #tpu.memory_space<vmem>>) attributes {dimension_semantics = [#tpu.dimension_semantics<parallel>, #tpu.dimension_semantics<arbitrary>], iteration_bounds = array<i64: 2, 1>, scalar_prefetch = 0 : i64, scratch_operands = 1 : i64, tpu.core_type = #tpu.core_type<tc>, window_params = [{transform_indices = @transform_0, window_bounds = array<i64: 1, 16, 192>}, {pipeline_mode = #tpu.pipeline_mode<synchronous>, transform_indices = @transform_1, window_bounds = array<i64: 192, 128>}, {transform_indices = @transform_2, window_bounds = array<i64: 16, 128>}, {pipeline_mode = #tpu.pipeline_mode<synchronous>, transform_indices = @transform_3, window_bounds = array<i64: 8, 128>}, {transform_indices = @transform_4, window_bounds = array<i64: 1, 1, 256>}]} {
    %c1 = arith.constant 1 : index
    %c0 = arith.constant 0 : index
    %0 = vector.load %arg5[%c1, %c0] : memref<8x128xf32, #tpu.memory_space<vmem>>, vector<1x128xf32>
    %c2 = arith.constant 2 : index
    %c0_0 = arith.constant 0 : index
    %1 = vector.load %arg5[%c2, %c0_0] : memref<8x128xf32, #tpu.memory_space<vmem>>, vector<1x128xf32>
    %c0_i32 = arith.constant 0 : i32
    %2 = arith.cmpi eq, %arg1, %c0_i32 : i32
    %3 = arith.extui %2 : i1 to i32
    %c0_i32_1 = arith.constant 0 : i32
    %4 = arith.cmpi ne, %3, %c0_i32_1 : i32
    scf.if %4 {
      %cst_21 = arith.constant 0.000000e+00 : f32
      %41 = vector.broadcast %cst_21 : f32 to vector<1x128xf32>
      %c0_22 = arith.constant 0 : index
      %c0_23 = arith.constant 0 : index
      %42 = vector.load %arg7[%c0_22, %c0_23] : memref<1x128xf32, #tpu.memory_space<vmem>>, vector<1x128xf32>
      tpu.vector_store %arg7[%c0_22, %c0_23], %41 {strides = array<i32>} : memref<1x128xf32, #tpu.memory_space<vmem>>, vector<1x128xf32>,
    } else {
    }
    %c0_2 = arith.constant 0 : index
    %c0_3 = arith.constant 0 : index
    %c0_4 = arith.constant 0 : index
    %5 = vector.load %arg2[%c0_2, %c0_3, %c0_4] : memref<1x16x192xbf16, #tpu.memory_space<vmem>>, vector<1x16x192xbf16>
    %6 = vector.shape_cast %5 : vector<1x16x192xbf16> to vector<16x192xbf16>
    %c0_5 = arith.constant 0 : index
    %c0_6 = arith.constant 0 : index
    %7 = vector.load %arg3[%c0_5, %c0_6] : memref<192x128xbf16, #tpu.memory_space<vmem>>, vector<192x128xbf16>
    %cst = arith.constant dense<0.000000e+00> : vector<16x128xf32>
    %8 = tpu.matmul %6, %7, %cst {dimension_numbers = #tpu.dot_dimension_numbers<[1], [0], [0], [1], [0, 0, 1, 1], [], []>} : vector<16x192xbf16>, vector<192x128xbf16>, vector<16x128xf32> -> vector<16x128xf32>
    %c0_7 = arith.constant 0 : index
    %c0_8 = arith.constant 0 : index
    %9 = vector.load %arg4[%c0_7, %c0_8] : memref<16x128xf32, #tpu.memory_space<vmem>>, vector<16x128xf32>
    %10 = arith.addf %8, %9 : vector<16x128xf32>
    %cst_9 = arith.constant dense<0.000000e+00> : vector<16xf32>
    %11 = vector.multi_reduction <add>, %10, %cst_9 [1] : vector<16x128xf32> to vector<16xf32>
    %12 = vector.shape_cast %11 : vector<16xf32> to vector<16x1xf32>
    %13 = arith.mulf %10, %10 : vector<16x128xf32>
    %cst_10 = arith.constant dense<0.000000e+00> : vector<16xf32>
    %14 = vector.multi_reduction <add>, %13, %cst_10 [1] : vector<16x128xf32> to vector<16xf32>
    %15 = vector.shape_cast %14 : vector<16xf32> to vector<16x1xf32>
    %cst_11 = arith.constant 7.812500e-03 : f32
    %16 = vector.broadcast %cst_11 : f32 to vector<16x1xf32>
    %17 = arith.mulf %12, %16 : vector<16x1xf32>
    %cst_12 = arith.constant 7.812500e-03 : f32
    %18 = vector.broadcast %cst_12 : f32 to vector<16x1xf32>
    %19 = arith.mulf %15, %18 : vector<16x1xf32>
    %20 = arith.mulf %17, %17 : vector<16x1xf32>
    %21 = arith.subf %19, %20 : vector<16x1xf32>
    %22 = vector.broadcast %17 : vector<16x1xf32> to vector<16x128xf32>
    %23 = arith.subf %10, %22 : vector<16x128xf32>
    %cst_13 = arith.constant 9.99999997E-7 : f32
    %24 = vector.broadcast %cst_13 : f32 to vector<16x1xf32>
    %25 = arith.addf %21, %24 : vector<16x1xf32>
    %26 = math.rsqrt %25 : vector<16x1xf32>
    %27 = vector.broadcast %26 : vector<16x1xf32> to vector<16x128xf32>
    %28 = arith.mulf %23, %27 : vector<16x128xf32>
    %29 = vector.broadcast %0 : vector<1x128xf32> to vector<16x128xf32>
    %30 = arith.mulf %28, %29 : vector<16x128xf32>
    %31 = vector.broadcast %1 : vector<1x128xf32> to vector<16x128xf32>
    %32 = arith.addf %30, %31 : vector<16x128xf32>
    %c0_14 = arith.constant 0 : index
    %c0_15 = arith.constant 0 : index
    %33 = vector.load %arg7[%c0_14, %c0_15] : memref<1x128xf32, #tpu.memory_space<vmem>>, vector<1x128xf32>
    %cst_16 = arith.constant dense<0.000000e+00> : vector<128xf32>
    %34 = vector.multi_reduction <add>, %32, %cst_16 [0] : vector<16x128xf32> to vector<128xf32>
    %35 = vector.shape_cast %34 : vector<128xf32> to vector<1x128xf32>
    %36 = arith.addf %33, %35 : vector<1x128xf32>
    %c0_17 = arith.constant 0 : index
    %c0_18 = arith.constant 0 : index
    %37 = vector.load %arg7[%c0_17, %c0_18] : memref<1x128xf32, #tpu.memory_space<vmem>>, vector<1x128xf32>
    tpu.vector_store %arg7[%c0_17, %c0_18], %36 {strides = array<i32>} : memref<1x128xf32, #tpu.memory_space<vmem>>, vector<1x128xf32>,
    %c0_i32_19 = arith.constant 0 : i32
    %38 = arith.cmpi eq, %arg1, %c0_i32_19 : i32
    %39 = arith.extui %38 : i1 to i32
    %c0_i32_20 = arith.constant 0 : i32
    %40 = arith.cmpi ne, %39, %c0_i32_20 : i32
    scf.if %40 {
      %c0_21 = arith.constant 0 : index
      %c0_22 = arith.constant 0 : index
      %41 = vector.load %arg5[%c0_21, %c0_22] : memref<8x128xf32, #tpu.memory_space<vmem>>, vector<1x128xf32>
      %cst_23 = arith.constant dense<0.000000e+00> : vector<1xf32>
      %42 = vector.multi_reduction <add>, %41, %cst_23 [1] : vector<1x128xf32> to vector<1xf32>
      %43 = vector.shape_cast %42 : vector<1xf32> to vector<1x1xf32>
      %44 = arith.mulf %41, %41 : vector<1x128xf32>
      %cst_24 = arith.constant dense<0.000000e+00> : vector<1xf32>
      %45 = vector.multi_reduction <add>, %44, %cst_24 [1] : vector<1x128xf32> to vector<1xf32>
      %46 = vector.shape_cast %45 : vector<1xf32> to vector<1x1xf32>
      %cst_25 = arith.constant 7.812500e-03 : f32
      %47 = vector.broadcast %cst_25 : f32 to vector<1x1xf32>
      %48 = arith.mulf %43, %47 : vector<1x1xf32>
      %cst_26 = arith.constant 7.812500e-03 : f32
      %49 = vector.broadcast %cst_26 : f32 to vector<1x1xf32>
      %50 = arith.mulf %46, %49 : vector<1x1xf32>
      %51 = arith.mulf %48, %48 : vector<1x1xf32>
      %52 = arith.subf %50, %51 : vector<1x1xf32>
      %53 = vector.broadcast %48 : vector<1x1xf32> to vector<1x128xf32>
      %54 = arith.subf %41, %53 : vector<1x128xf32>
      %cst_27 = arith.constant 9.99999997E-7 : f32
      %55 = vector.broadcast %cst_27 : f32 to vector<1x1xf32>
      %56 = arith.addf %52, %55 : vector<1x1xf32>
      %57 = math.rsqrt %56 : vector<1x1xf32>
      %58 = vector.broadcast %57 : vector<1x1xf32> to vector<1x128xf32>
      %59 = arith.mulf %54, %58 : vector<1x128xf32>
      %60 = arith.mulf %59, %0 : vector<1x128xf32>
      %61 = arith.addf %60, %1 : vector<1x128xf32>
      %c0_28 = arith.constant 0 : index
      %c0_29 = arith.constant 0 : index
      %62 = vector.load %arg7[%c0_28, %c0_29] : memref<1x128xf32, #tpu.memory_space<vmem>>, vector<1x128xf32>
      %cst_30 = arith.constant 6.250000e-02 : f32
      %63 = vector.broadcast %cst_30 : f32 to vector<1x128xf32>
      %64 = arith.mulf %62, %63 : vector<1x128xf32>
      %65 = arith.mulf %61, %61 : vector<1x128xf32>
      %cst_31 = arith.constant dense<0.000000e+00> : vector<1xf32>
      %66 = vector.multi_reduction <add>, %65, %cst_31 [1] : vector<1x128xf32> to vector<1xf32>
      %67 = vector.shape_cast %66 : vector<1xf32> to vector<1x1xf32>
      %68 = arith.mulf %64, %64 : vector<1x128xf32>
      %cst_32 = arith.constant dense<0.000000e+00> : vector<1xf32>
      %69 = vector.multi_reduction <add>, %68, %cst_32 [1] : vector<1x128xf32> to vector<1xf32>
      %70 = vector.shape_cast %69 : vector<1xf32> to vector<1x1xf32>
      %71 = arith.addf %67, %70 : vector<1x1xf32>
      %cst_33 = arith.constant 1.000000e-24 : f32
      %72 = vector.broadcast %cst_33 : f32 to vector<1x1xf32>
      %73 = arith.maximumf %71, %72 : vector<1x1xf32>
      %74 = math.rsqrt %73 : vector<1x1xf32>
      %75 = vector.broadcast %74 : vector<1x1xf32> to vector<1x128xf32>
      %76 = arith.mulf %61, %75 : vector<1x128xf32>
      %77 = vector.shape_cast %76 : vector<1x128xf32> to vector<1x1x128xf32>
      %c0_34 = arith.constant 0 : index
      %c0_35 = arith.constant 0 : index
      %c0_36 = arith.constant 0 : index
      %78 = vector.load %arg6[%c0_34, %c0_35, %c0_36] : memref<1x1x256xf32, #tpu.memory_space<vmem>>, vector<1x1x128xf32>
      tpu.vector_store %arg6[%c0_34, %c0_35, %c0_36], %77 {strides = array<i32>} : memref<1x1x256xf32, #tpu.memory_space<vmem>>, vector<1x1x128xf32>,
      %79 = vector.broadcast %74 : vector<1x1xf32> to vector<1x128xf32>
      %80 = arith.mulf %64, %79 : vector<1x128xf32>
      %81 = vector.shape_cast %80 : vector<1x128xf32> to vector<1x1x128xf32>
      %c0_37 = arith.constant 0 : index
      %c0_38 = arith.constant 0 : index
      %c128 = arith.constant 128 : index
      %82 = vector.load %arg6[%c0_37, %c0_38, %c128] : memref<1x1x256xf32, #tpu.memory_space<vmem>>, vector<1x1x128xf32>
      tpu.vector_store %arg6[%c0_37, %c0_38, %c128], %81 {strides = array<i32>} : memref<1x1x256xf32, #tpu.memory_space<vmem>>, vector<1x1x128xf32>,
    } else {
    }
    return
  }
  func.func @transform_0(%arg0: i32, %arg1: i32) -> (i32, i32, i32) {
    %c0_i32 = arith.constant 0 : i32
    %c0_i32_0 = arith.constant 0 : i32
    return %arg0, %arg1, %c0_i32 : i32, i32, i32
  }
  func.func @transform_1(%arg0: i32, %arg1: i32) -> (i32, i32) {
    %c0_i32 = arith.constant 0 : i32
    %c0_i32_0 = arith.constant 0 : i32
    %c0_i32_1 = arith.constant 0 : i32
    return %c0_i32, %c0_i32_0 : i32, i32
  }
  func.func @transform_2(%arg0: i32, %arg1: i32) -> (i32, i32) {
    %c0_i32 = arith.constant 0 : i32
    %c0_i32_0 = arith.constant 0 : i32
    return %arg1, %c0_i32 : i32, i32
  }
  func.func @transform_3(%arg0: i32, %arg1: i32) -> (i32, i32) {
    %c0_i32 = arith.constant 0 : i32
    %c0_i32_0 = arith.constant 0 : i32
    %c0_i32_1 = arith.constant 0 : i32
    return %c0_i32, %c0_i32_0 : i32, i32
  }
  func.func @transform_4(%arg0: i32, %arg1: i32) -> (i32, i32, i32) {
    %c0_i32 = arith.constant 0 : i32
    %c0_i32_0 = arith.constant 0 : i32
    %c0_i32_1 = arith.constant 0 : i32
    return %arg0, %c0_i32, %c0_i32_0 : i32, i32, i32
  }
}

</mosaic_0001>

<llo_original>
// kernel: tpu_custom_call.1
$region0: #{tpu_custom_call.1}
  #allocation0 [shape = 'u32[]', space=smem, size = 0x4, offset = 0x4, fixed_abs, tag = 'smem constant byte address 0x4 - core index']
  #allocation1 [shape = 'u32[144,128]{1,0:T(1,128)}', space=vmem, size = 0x12000, scoped, tag = 'internal scratch']
  #allocation2 [shape = 'f32[1,128]{1,0:T(1,128)}', space=vmem, size = 0x200, scoped, tag = 'scratch operand']
  %s0 = inlined_call_operand.hbm [shape: bf16[2,16,192], index: 0, kind: input, shape index: {}]
  %s1 = inlined_call_operand.hbm [shape: bf16[192,128], index: 1, kind: input, shape index: {}]
  %s2 = inlined_call_operand.hbm [shape: f32[16,128], index: 2, kind: input, shape index: {}]
  %s3 = inlined_call_operand.vmem [shape: f32[8,128], index: 3, kind: input, shape index: {}]
  %s4 = inlined_call_operand.hbm [shape: f32[2,1,256], index: 4, kind: output, shape index: {}]
  %s5 = sld [smem:[#allocation0]]
  $region69: #{tpu_custom_call.1} parent=0
    _
  %s7 = ssub.s32 1, %s5
  %s8 = scalar_select 0, %s7, %s5
  $region1: #{tpu_custom_call.1} parent=0
    #allocation3 [shape = 'u8[16384]{0}', space=vmem, size = 0x4000, scoped, tag = 'input window, operand 0']
    #allocation4 [shape = 's32[2]{0}', space=sflag, size = 0x8, scoped, tag = 'scoped memory for tpu_custom_call.1']
    #allocation5 [shape = 's32[2]{0}', space=sflag, size = 0x8, scoped, tag = 'scoped memory for tpu_custom_call.1']
    #allocation6 [shape = 'u8[49152]{0}', space=vmem, size = 0xc000, scoped, tag = 'input window, operand 1, single buffered']
    #allocation7 [shape = 's32[1]{0}', space=sflag, size = 0x4, scoped, tag = 'scoped memory for tpu_custom_call.1']
    #allocation8 [shape = 'u8[8192]{0}', space=vmem, size = 0x2000, scoped, tag = 'input window, operand 2, single buffered']
    #allocation9 [shape = 'u8[2048]{0}', space=vmem, size = 0x800, scoped, tag = 'output window, operand 0']
    %9 = vsyncpa [#allocation4], 0
    %s10 = scalar_lea.sflag [#allocation4], 1
    %11 = vsyncpa %s10, 0
    %12 = vsyncpa [#allocation7], 0
    %13 = vsyncpa [#allocation5], 0
    %s14 = scalar_lea.sflag [#allocation5], 1
    %15 = vsyncpa %s14, 0
    loop: start=0, step=1, limit=4
    $region2: #{tpu_custom_call.1} parent=1 // loop_pre_header
      _
    $region3: #{tpu_custom_call.1} parent=1 // loop_header
      %s17 = sphi 0, %s21
      %p18 = scmp.ge.s32.totalorder %s17, 4
      %s24 = sphi 0, %s36
      %s25 = sphi 0, %s32
      %s26 = sphi 0, %s24
      %s27 = sphi 0, %s25
      %s28 = sphi 0, %s26
      %s29 = sphi 0, %s27
      %s41 = sphi 0, %s43
      %s44 = sphi 0, %s41
      %s45 = sphi 0, %s44
      %s61 = sphi 0, %s45
      %s65 = sphi 0, %s65
      %s67 = sphi 0, %s65
      %s68 = sphi 0, %s67
      %s82 = sphi 0, %s68
      %s88 = sphi 0, %s90
      %s91 = sphi 0, %s88
      %s92 = sphi 0, %s91
      %s108 = sphi 0, %s92
      %s112 = sphi 0, %s112
      %s114 = sphi 0, %s112
      %s115 = sphi 0, %s114
      %s129 = sphi 0, %s115
      %s135 = sphi 0, %s137
      %s138 = sphi 0, %s135
      %s139 = sphi 0, %s138
      %s155 = sphi 0, %s139
    $region4: #{tpu_custom_call.1} parent=1 // loop_header_branch
      %20 = sbr.rel (%p18) target = $region8
    $region5: #{tpu_custom_call.1} parent=1 // loop_body
      %s22 = ssub.s32 %s17, 1
      %s23 = ssub.s32 %s17, 2
      %s30 = sadd.s32 1, %s25
      %p31 = scmp.ge.s32.totalorder %s30, 1
      %s32 = scalar_select %p31, 0, %s30
      %s33 = sadd.s32 1, %s24
      %s34 = scalar_select %p31, %s33, %s24
      %p35 = scmp.ge.s32.totalorder %s34, 2
      %s36 = scalar_select %p35, 0, %s34
      %s37 = ssub.s32 %s24, %s36
      %s38 = ssub.s32 %s25, %s32
      %s39 = sor.u32 %s37, %s38
      %p40 = scmp.eq.s32.totalorder %s39, 0
      %s42 = sadd.s32 %s41, 1
      %s43 = scalar_select %p40, %s41, %s42
      %p46 = pneg %p40
      %p47 = scmp.eq.s32.totalorder %s17, 1
      %p48 = por %p46, %p47
      %p49 = scmp.ne.s32.totalorder %s41, %s44
      %p50 = scmp.eq.s32.totalorder %s17, 0
      %p51 = por %p49, %p50
      %p52 = scmp.ne.s32.totalorder %s41, %s44
      %p53 = scmp.eq.s32.totalorder %s22, 1
      %p54 = por %p52, %p53
      %p55 = scmp.ne.s32.totalorder %s44, %s45
      %p56 = scmp.eq.s32.totalorder %s22, 0
      %p57 = por %p55, %p56
      %p58 = scmp.ne.s32.totalorder %s44, %s45
      %p59 = scmp.eq.s32.totalorder %s23, 1
      %p60 = por %p58, %p59
      %p62 = scmp.ne.s32.totalorder %s45, %s61
      %p63 = scmp.eq.s32.totalorder %s23, 0
      %p64 = por %p62, %p63
      %s66 = sadd.s32 %s65, 1
      %p69 = scmp.eq.s32.totalorder %s17, 1
      %p70 = scmp.ne.s32.totalorder %s65, %s67
      %p71 = scmp.eq.s32.totalorder %s17, 0
      %p72 = por %p70, %p71
      %p73 = scmp.ne.s32.totalorder %s65, %s67
      %p74 = scmp.eq.s32.totalorder %s22, 1
      %p75 = por %p73, %p74
      %p76 = scmp.ne.s32.totalorder %s67, %s68
      %p77 = scmp.eq.s32.totalorder %s22, 0
      %p78 = por %p76, %p77
      %p79 = scmp.ne.s32.totalorder %s67, %s68
      %p80 = scmp.eq.s32.totalorder %s23, 1
      %p81 = por %p79, %p80
      %p83 = scmp.ne.s32.totalorder %s68, %s82
      %p84 = scmp.eq.s32.totalorder %s23, 0
      %p85 = por %p83, %p84
      %s86 = ssub.s32 %s25, %s32
      %p87 = scmp.eq.s32.totalorder %s86, 0
      %s89 = sadd.s32 %s88, 1
      %s90 = scalar_select %p87, %s88, %s89
      %p93 = pneg %p87
      %p94 = scmp.eq.s32.totalorder %s17, 1
      %p95 = por %p93, %p94
      %p96 = scmp.ne.s32.totalorder %s88, %s91
      %p97 = scmp.eq.s32.totalorder %s17, 0
      %p98 = por %p96, %p97
      %p99 = scmp.ne.s32.totalorder %s88, %s91
      %p100 = scmp.eq.s32.totalorder %s22, 1
      %p101 = por %p99, %p100
      %p102 = scmp.ne.s32.totalorder %s91, %s92
      %p103 = scmp.eq.s32.totalorder %s22, 0
      %p104 = por %p102, %p103
      %p105 = scmp.ne.s32.totalorder %s91, %s92
      %p106 = scmp.eq.s32.totalorder %s23, 1
      %p107 = por %p105, %p106
      %p109 = scmp.ne.s32.totalorder %s92, %s108
      %p110 = scmp.eq.s32.totalorder %s23, 0
      %p111 = por %p109, %p110
      %s113 = sadd.s32 %s112, 1
      %p116 = scmp.eq.s32.totalorder %s17, 1
      %p117 = scmp.ne.s32.totalorder %s112, %s114
      %p118 = scmp.eq.s32.totalorder %s17, 0
      %p119 = por %p117, %p118
      %p120 = scmp.ne.s32.totalorder %s112, %s114
      %p121 = scmp.eq.s32.totalorder %s22, 1
      %p122 = por %p120, %p121
      %p123 = scmp.ne.s32.totalorder %s114, %s115
      %p124 = scmp.eq.s32.totalorder %s22, 0
      %p125 = por %p123, %p124
      %p126 = scmp.ne.s32.totalorder %s114, %s115
      %p127 = scmp.eq.s32.totalorder %s23, 1
      %p128 = por %p126, %p127
      %p130 = scmp.ne.s32.totalorder %s115, %s129
      %p131 = scmp.eq.s32.totalorder %s23, 0
      %p132 = por %p130, %p131
      %s133 = ssub.s32 %s24, %s36
      %p134 = scmp.eq.s32.totalorder %s133, 0
      %s136 = sadd.s32 %s135, 1
      %s137 = scalar_select %p134, %s135, %s136
      %p140 = pneg %p134
      %p141 = scmp.eq.s32.totalorder %s17, 1
      %p142 = por %p140, %p141
      %p143 = scmp.ne.s32.totalorder %s135, %s138
      %p144 = scmp.eq.s32.totalorder %s17, 0
      %p145 = por %p143, %p144
      %p146 = scmp.ne.s32.totalorder %s135, %s138
      %p147 = scmp.eq.s32.totalorder %s22, 1
      %p148 = por %p146, %p147
      %p149 = scmp.ne.s32.totalorder %s138, %s139
      %p150 = scmp.eq.s32.totalorder %s22, 0
      %p151 = por %p149, %p150
      %p152 = scmp.ne.s32.totalorder %s138, %s139
      %p153 = scmp.eq.s32.totalorder %s23, 1
      %p154 = por %p152, %p153
      %p156 = scmp.ne.s32.totalorder %s139, %s155
      %p157 = scmp.eq.s32.totalorder %s23, 0
      %p158 = por %p156, %p157
      %p159 = scmp.le.s32.totalorder 1, %s17
      %p160 = scmp.lt.s32.totalorder %s17, 3
      %p161 = pnand %p159, %p160
      %p162 = pneg %p161
      // Predicated region
      $region9: #{tpu_custom_call.1} parent=5 // pred_check
        _
      $region10: #{tpu_custom_call.1} parent=5 // pred_check_branch
        %164 = sbr.rel (%p161) target = $region12
      $region11: #{tpu_custom_call.1} parent=5 // pred_region
        %s165 = ssub.s32 %s17, 1
        // Predicated region
        $region13: #{tpu_custom_call.1} parent=11 // pred_check
          %p166 = pneg %p78
        $region14: #{tpu_custom_call.1} parent=11 // pred_check_branch
          %168 = sbr.rel (%p166) target = $region16
        $region15: #{tpu_custom_call.1} parent=11 // pred_region
          %s170 = ssub.s32 1536, 1536
          %171 = vsyncadd [#allocation7], %s170
          %s172 = sshll.u32 [#allocation6], 4
          %s173 = int_to_ptr.vmem [resolvable:$true] %s172
          %178 = dma.hbm_to_vmem [thread:$0]  %s1, 1536, %s173, [#allocation7], 64, 64, 4
        $region16: #{tpu_custom_call.1} parent=11 // pred_fallthru
          _
        // Predicated region
        $region17: #{tpu_custom_call.1} parent=11 // pred_check
          %p179 = pneg %p104
        $region18: #{tpu_custom_call.1} parent=11 // pred_check_branch
          %181 = sbr.rel (%p179) target = $region20
        $region19: #{tpu_custom_call.1} parent=11 // pred_region
          %s182 = smul.u32 2, %s27
          %s184 = ssub.s32 256, 256
          %185 = vsyncadd [#allocation7], %s184
          %s186 = smul.addr %s182, 128
          %s187 = scalar_lea.hbm %s2, %s186
          %s188 = sshll.u32 [#allocation8], 4
          %s189 = int_to_ptr.vmem [resolvable:$true] %s188
          %194 = dma.hbm_to_vmem [thread:$0]  %s187, 256, %s189, [#allocation7], 128, 128, 8
        $region20: #{tpu_custom_call.1} parent=11 // pred_fallthru
          _
        // Predicated region
        $region21: #{tpu_custom_call.1} parent=11 // pred_check
          %p195 = pneg %p125
        $region22: #{tpu_custom_call.1} parent=11 // pred_check_branch
          %197 = sbr.rel (%p195) target = $region24
        $region23: #{tpu_custom_call.1} parent=11 // pred_region
          _
        $region24: #{tpu_custom_call.1} parent=11 // pred_fallthru
          _
      $region12: #{tpu_custom_call.1} parent=5 // pred_fallthru
        _
      %p198 = scmp.lt.s32.totalorder %s17, 2
      // Predicated region
      $region25: #{tpu_custom_call.1} parent=5 // pred_check
        %p199 = pneg %p198
      $region26: #{tpu_custom_call.1} parent=5 // pred_check_branch
        %201 = sbr.rel (%p199) target = $region28
      $region27: #{tpu_custom_call.1} parent=5 // pred_region
        // Predicated region
        $region29: #{tpu_custom_call.1} parent=27 // pred_check
          %p202 = pneg %p51
        $region30: #{tpu_custom_call.1} parent=27 // pred_check_branch
          %204 = sbr.rel (%p202) target = $region32
        $region31: #{tpu_custom_call.1} parent=27 // pred_region
          %s205 = sand.u32 %s41, 1
          %s206 = scalar_lea.sflag [#allocation4], %s205
          %s207 = sand.u32 %s41, 1
          %s208 = smul.addr %s207, 16
          %s209 = scalar_lea.vmem [#allocation3], %s208
          %s210 = smul.u32 2, %s25
          %s212 = ssub.s32 256, 256
          %213 = vsyncadd %s206, %s212
          %s214 = smul.addr %s210, 2
          %s215 = smul.addr %s24, 4
          %s216 = sadd.s32 %s214, %s215
          %s217 = smul.addr %s216, 64
          %s218 = scalar_lea.hbm %s0, %s217
          %s219 = sshll.u32 %s209, 4
          %s220 = int_to_ptr.vmem [resolvable:$true] %s219
          %225 = dma.hbm_to_vmem [thread:$0]  %s218, 256, %s220, %s206, 128, 128, 8
        $region32: #{tpu_custom_call.1} parent=27 // pred_fallthru
          _
      $region28: #{tpu_custom_call.1} parent=5 // pred_fallthru
        _
      %p226 = scmp.le.s32.totalorder 1, %s17
      %p227 = scmp.lt.s32.totalorder %s17, 3
      %p228 = pnand %p226, %p227
      %p229 = pneg %p228
      // Predicated region
      $region33: #{tpu_custom_call.1} parent=5 // pred_check
        _
      $region34: #{tpu_custom_call.1} parent=5 // pred_check_branch
        %231 = sbr.rel (%p228) target = $region36
      $region35: #{tpu_custom_call.1} parent=5 // pred_region
        %s232 = ssub.s32 %s17, 1
        %s233 = sand.u32 %s44, 1
        %s234 = scalar_lea.sflag [#allocation4], %s233
        %s235 = sand.u32 %s44, 1
        %s236 = smul.addr %s235, 16
        %s237 = scalar_lea.vmem [#allocation3], %s236
        // Predicated region
        $region37: #{tpu_custom_call.1} parent=35 // pred_check
          %p238 = pneg %p57
        $region38: #{tpu_custom_call.1} parent=35 // pred_check_branch
          %240 = sbr.rel (%p238) target = $region40
        $region39: #{tpu_custom_call.1} parent=35 // pred_region
          %241 = dma.done %s234, 256
        $region40: #{tpu_custom_call.1} parent=35 // pred_fallthru
          _
        // Predicated region
        $region41: #{tpu_custom_call.1} parent=35 // pred_check
          %p242 = pneg %p78
        $region42: #{tpu_custom_call.1} parent=35 // pred_check_branch
          %244 = sbr.rel (%p242) target = $region44
        $region43: #{tpu_custom_call.1} parent=35 // pred_region
          %245 = dma.done [#allocation7], 1536
        $region44: #{tpu_custom_call.1} parent=35 // pred_fallthru
          _
        // Predicated region
        $region45: #{tpu_custom_call.1} parent=35 // pred_check
          %p246 = pneg %p104
        $region46: #{tpu_custom_call.1} parent=35 // pred_check_branch
          %248 = sbr.rel (%p246) target = $region48
        $region47: #{tpu_custom_call.1} parent=35 // pred_region
          %249 = dma.done [#allocation7], 256
        $region48: #{tpu_custom_call.1} parent=35 // pred_fallthru
          _
        %s250 = sand.u32 %s44, 1
        %s251 = scalar_lea.sflag [#allocation4], %s250
        %s252 = sand.u32 %s44, 1
        %s253 = smul.addr %s252, 16
        %s254 = scalar_lea.vmem [#allocation3], %s253
        %p255 = pneg %p57
        %p256 = pneg %p54
        %p257 = pneg %p78
        %p258 = pneg %p75
        %p259 = pneg %p104
        %p260 = pneg %p101
        %p261 = pneg %p125
        %p262 = pneg %p122
        %p263 = pneg %p151
        %p264 = pneg %p148
        %s265 = sand.u32 %s138, 1
        %s266 = scalar_lea.sflag [#allocation5], %s265
        %s267 = sand.u32 %s138, 1
        %s268 = smul.addr %s267, 2
        %s269 = scalar_lea.vmem [#allocation9], %s268
        %s270 = smul.u32 2, %s27
        %s271 = smul.u32 2, %s27
        %v273 = vld [vmem:[%s3 + $0x1] sm:$0x1]
        %v274 = vld [vmem:[%s3 + $0x2] sm:$0x1]
        %p275 = scmp.eq.s32.totalorder %s27, 0
        // Predicated region
        $region49: #{tpu_custom_call.1} parent=35 // pred_check
          %p276 = pneg %p275
        $region50: #{tpu_custom_call.1} parent=35 // pred_check_branch
          %278 = sbr.rel (%p276) target = $region52
        $region51: #{tpu_custom_call.1} parent=35 // pred_region
          %279 = vst [vmem:[#allocation2] sm:$0x1] 0.0
        $region52: #{tpu_custom_call.1} parent=35 // pred_fallthru
          _
        %v280 = vld [vmem:[%s237] sm:$0xff]
        %v281 = vld [vmem:[%s237 + $0x8] sm:$0xff]
        %v282 = vld [vmem:[#allocation6] sm:$0xf]
        %v283 = vld [vmem:[#allocation6 + $0x4] sm:$0xf]
        %v284 = vld [vmem:[#allocation6 + $0x8] sm:$0xf]
        %v285 = vld [vmem:[#allocation6 + $0xc] sm:$0xf]
        %v286 = vld [vmem:[#allocation6 + $0x10] sm:$0xf]
        %v287 = vld [vmem:[#allocation6 + $0x14] sm:$0xf]
        %v288 = vld [vmem:[#allocation6 + $0x18] sm:$0xf]
        %v289 = vld [vmem:[#allocation6 + $0x1c] sm:$0xf]
        %v290 = vld [vmem:[#allocation6 + $0x20] sm:$0xf]
        %v291 = vld [vmem:[#allocation6 + $0x24] sm:$0xf]
        %v292 = vld [vmem:[#allocation6 + $0x28] sm:$0xf]
        %v293 = vld [vmem:[#allocation6 + $0x2c] sm:$0xf]
        %v294 = vld [vmem:[#allocation6 + $0x30] sm:$0xf]
        %v295 = vld [vmem:[#allocation6 + $0x34] sm:$0xf]
        %v296 = vld [vmem:[#allocation6 + $0x38] sm:$0xf]
        %v297 = vld [vmem:[#allocation6 + $0x3c] sm:$0xf]
        %v298 = vld [vmem:[#allocation6 + $0x40] sm:$0xf]
        %v299 = vld [vmem:[#allocation6 + $0x44] sm:$0xf]
        %v300 = vld [vmem:[#allocation6 + $0x48] sm:$0xf]
        %v301 = vld [vmem:[#allocation6 + $0x4c] sm:$0xf]
        %v302 = vld [vmem:[#allocation6 + $0x50] sm:$0xf]
        %v303 = vld [vmem:[#allocation6 + $0x54] sm:$0xf]
        %v304 = vld [vmem:[#allocation6 + $0x58] sm:$0xf]
        %v305 = vld [vmem:[#allocation6 + $0x5c] sm:$0xf]
        %v306 = vld [vmem:[#allocation8] sm:$0xff]
        %v307 = vld [vmem:[#allocation8 + $0x8] sm:$0xff]
        %v310 = vunpack.c.l.b16 %v280
        %v311 = vunpack.c.h.b16 %v280
        %v312 = vunpack.c.l.b16 %v281
        %v313 = vunpack.c.h.b16 %v281
        %v314 = vpack.c.b16 %v312, %v310
        %v315 = vpack.c.b16 %v313, %v311
        %v341 = vunpack.c.l.b16 %v282
        %v342 = vunpack.c.l.b16 %v283
        %v343 = vunpack.c.l.b16 %v284
        %v344 = vunpack.c.l.b16 %v285
        %v345 = vunpack.c.l.b16 %v286
        %v346 = vunpack.c.l.b16 %v287
        %v347 = vunpack.c.l.b16 %v288
        %v348 = vunpack.c.l.b16 %v289
        %v349 = vunpack.c.l.b16 %v290
        %v350 = vunpack.c.l.b16 %v291
        %v351 = vunpack.c.l.b16 %v292
        %v352 = vunpack.c.l.b16 %v293
        %v353 = vunpack.c.l.b16 %v294
        %v354 = vunpack.c.l.b16 %v295
        %v355 = vunpack.c.l.b16 %v296
        %v356 = vunpack.c.l.b16 %v297
        %v357 = vunpack.c.l.b16 %v298
        %v358 = vunpack.c.l.b16 %v299
        %v359 = vunpack.c.l.b16 %v300
        %v360 = vunpack.c.l.b16 %v301
        %v361 = vunpack.c.l.b16 %v302
        %v362 = vunpack.c.l.b16 %v303
        %v363 = vunpack.c.l.b16 %v304
        %v364 = vunpack.c.l.b16 %v305
        %v365 = vpack.c.b16 %v342, %v341
        %v366 = vpack.c.b16 %v344, %v343
        %v367 = vpack.c.b16 %v346, %v345
        %v368 = vpack.c.b16 %v348, %v347
        %v369 = vpack.c.b16 %v350, %v349
        %v370 = vpack.c.b16 %v352, %v351
        %v371 = vpack.c.b16 %v354, %v353
        %v372 = vpack.c.b16 %v356, %v355
        %v373 = vpack.c.b16 %v358, %v357
        %v374 = vpack.c.b16 %v360, %v359
        %v375 = vpack.c.b16 %v362, %v361
        %v376 = vpack.c.b16 %v364, %v363
        %vm389 = vcmask 523264
        %v391 = vsel %vm389, %v315, 0
        %393 = vmatprep.subr.bf16.mxu0 0
        %394 = vmatpush1.bf16.msra.mxu0 %v365
        %395 = vmatprep.subr.bf16.mxu0 0
        %396 = vmatpush1.bf16.msra.mxu0 %v366
        %397 = vmatprep.subr.bf16.mxu0 0
        %398 = vmatpush1.bf16.msra.mxu0 %v367
        %399 = vmatprep.subr.bf16.mxu0 0
        %400 = vmatpush1.bf16.msra.mxu0 %v368
        %401 = vmatprep.subr.bf16.mxu0 0
        %402 = vmatpush1.bf16.msra.mxu0 %v369
        %403 = vmatprep.subr.bf16.mxu0 0
        %404 = vmatpush1.bf16.msra.mxu0 %v370
        %405 = vmatprep.subr.bf16.mxu0 0
        %406 = vmatpush1.bf16.msra.mxu0 %v371
        %407 = vmatprep.subr.bf16.mxu0 0
        %408 = vmatpush1.bf16.msra.mxu0 %v372
        %409 = vmatprep.subr.bf16.mxu0 0
        %410 = vmatpush1.bf16.msra.mxu0 %v373
        %411 = vmatprep.subr.bf16.mxu0 0
        %412 = vmatpush1.bf16.msra.mxu0 %v374
        %413 = vmatprep.subr.bf16.mxu0 0
        %414 = vmatpush1.bf16.msra.mxu0 %v375
        %415 = vmatprep.subr.bf16.mxu0 0
        %416 = vmatpush1.bf16.msra.mxu0 %v376
        %417 = vmatprep.subr.bf16.mxu0 0
        %418 = vmatpush1.bf16.msra.mxu0 0
        %419 = vmatprep.subr.bf16.mxu0 0
        %420 = vmatpush1.bf16.msra.mxu0 0
        %421 = vmatprep.subr.bf16.mxu0 0
        %422 = vmatpush1.bf16.msra.mxu0 0
        %423 = vmatprep.subr.bf16.mxu0 0
        %424 = vmatpush1.bf16.msra.mxu0 0
        %425 = vmatprep.mubr.bf16.mxu0 %v391
        %426 = vmatmul.mubr.bf16.gmra.mrb[0].mxu0 %v314
        %v427 = vpop.f32.mrb[0].mxu0
        %v428 = vadd.f32 %v306, %v427
        %v429 = vpop.f32.mrb[0].mxu0
        %v430 = vpop.f32.mrb[0].mxu0
        %v431 = vadd.f32 %v307, %v430
        %v432 = vpop.f32.mrb[0].mxu0
        %433 = vdwg.mxu0
        %434 = vadd.xlane.f32.xlu0 %v428
        %v435 = vpop.xlane.xlu0 %434
        %436 = vadd.xlane.f32.xlu0 %v431
        %v437 = vpop.xlane.xlu0 %436
        %v438 = vmul.f32 %v428, %v428
        %v439 = vmul.f32 %v431, %v431
        %440 = vadd.xlane.f32.xlu0 %v438
        %v441 = vpop.xlane.xlu0 %440
        %442 = vadd.xlane.f32.xlu0 %v439
        %v443 = vpop.xlane.xlu0 %442
        %v444 = vmul.f32 %v435, 0.0078125
        %v445 = vmul.f32 %v437, 0.0078125
        %v446 = vmul.f32 %v441, 0.0078125
        %v447 = vmul.f32 %v443, 0.0078125
        %v448 = vmul.f32 %v444, %v444
        %v449 = vmul.f32 %v445, %v445
        %v450 = vsub.f32 %v446, %v448
        %v451 = vsub.f32 %v447, %v449
        %v452 = vsub.f32 %v428, %v444
        %v453 = vsub.f32 %v431, %v445
        %v454 = vadd.f32 %v450, 1e-06
        %v455 = vadd.f32 %v451, 1e-06
        %v456 = vrsqrt.pop %v454
        %v457 = vrsqrt.pop %v455
        %v458 = vmul.f32 %v452, %v456
        %v459 = vmul.f32 %v453, %v457
        %v460 = vlaneseq
        %v461 = vshrl.u32 %v460, 7
        %v462 = vsub.s32 0, %v461
        %v463 = vrot.slane %v273, %v462
        %v464 = vmul.f32 %v458, %v463
        %v465 = vmul.f32 %v459, %v463
        %v466 = vlaneseq
        %v467 = vshrl.u32 %v466, 7
        %v468 = vsub.s32 0, %v467
        %v469 = vrot.slane %v274, %v468
        %v470 = vadd.f32 %v464, %v469
        %v471 = vadd.f32 %v465, %v469
        %v472 = vld [vmem:[#allocation2] sm:$0x1]
        %v473 = vadd.f32 %v470, %v471
        %v474 = vrot.slane %v473, 4
        %v475 = vadd.f32 %v473, %v474
        %v476 = vrot.slane %v475, 2
        %v477 = vadd.f32 %v475, %v476
        %v478 = vrot.slane %v477, 1
        %v479 = vadd.f32 %v477, %v478
        %v480 = vadd.f32 %v472, %v479
        %481 = vst [vmem:[#allocation2] sm:$0x1] %v480
        // Predicated region
        $region53: #{tpu_custom_call.1} parent=35 // pred_check
          %p482 = pneg %p275
        $region54: #{tpu_custom_call.1} parent=35 // pred_check_branch
          %484 = sbr.rel (%p482) target = $region56
        $region55: #{tpu_custom_call.1} parent=35 // pred_region
          %v485 = vld [vmem:[%s3] sm:$0x1]
          %vm486 = vcmask 1040384
          %v487 = vsel %vm486, %v485, 0.0
          %488 = vadd.xlane.f32.xlu0 %v487
          %v489 = vpop.xlane.xlu0 %488
          %v490 = vmul.f32 %v485, %v485
          %v491 = vsel %vm486, %v490, 0.0
          %492 = vadd.xlane.f32.xlu0 %v491
          %v493 = vpop.xlane.xlu0 %492
          %v494 = vmul.f32 %v489, 0.0078125
          %v495 = vmul.f32 %v493, 0.0078125
          %v496 = vmul.f32 %v494, %v494
          %v497 = vsub.f32 %v495, %v496
          %v498 = vsub.f32 %v485, %v494
          %v499 = vadd.f32 %v497, 1e-06
          %v500 = vrsqrt.pop %v499
          %v501 = vmul.f32 %v498, %v500
          %v502 = vmul.f32 %v501, %v273
          %v503 = vadd.f32 %v502, %v274
          %v504 = vld [vmem:[#allocation2] sm:$0x1]
          %v505 = vmul.f32 %v504, 0.0625
          %v506 = vmul.f32 %v503, %v503
          %v507 = vsel %vm486, %v506, 0.0
          %508 = vadd.xlane.f32.xlu0 %v507
          %v509 = vpop.xlane.xlu0 %508
          %v510 = vmul.f32 %v505, %v505
          %v511 = vsel %vm486, %v510, 0.0
          %512 = vadd.xlane.f32.xlu0 %v511
          %v513 = vpop.xlane.xlu0 %512
          %v514 = vadd.f32 %v509, %v513
          %v515 = vmax.f32 %v514, 1e-24
          %v516 = vrsqrt.pop %v515
          %v517 = vmul.f32 %v503, %v516
          %v518 = vlaneseq
          %vm519 = vcmp.ge.s32.totalorder %v518, 0
          %vm520 = vcmp.lt.s32.totalorder %v518, 128
          %vm521 = vmand %vm519, %vm520
          %522 = vst.msk [vmem:[%s269] sm:$0x1] %vm521, %v517
          %v523 = vmul.f32 %v505, %v516
          %524 = vst.msk [vmem:[%s269 + $0x1] sm:$0x1] %vm521, %v523
        $region56: #{tpu_custom_call.1} parent=35 // pred_fallthru
          _
        %s525 = sand.u32 %s138, 1
        %s526 = scalar_lea.sflag [#allocation5], %s525
        %s527 = sand.u32 %s138, 1
        %s528 = smul.addr %s527, 2
        %s529 = scalar_lea.vmem [#allocation9], %s528
        // Predicated region
        $region57: #{tpu_custom_call.1} parent=35 // pred_check
          %p530 = pneg %p148
        $region58: #{tpu_custom_call.1} parent=35 // pred_check_branch
          %532 = sbr.rel (%p530) target = $region60
        $region59: #{tpu_custom_call.1} parent=35 // pred_region
          %s534 = ssub.s32 32, 32
          %535 = vsyncadd %s526, %s534
          %s536 = smul.addr %s26, 2
          %s537 = smul.addr %s536, 16
          %s538 = scalar_lea.hbm %s4, %s537
          %s540 = sshll.u32 %s529, 4
          %s541 = int_to_ptr.vmem [resolvable:$true] %s540
          %543 = dma.vmem_to_hbm [thread:$0]  %s541, 32, %s538, %s526
        $region60: #{tpu_custom_call.1} parent=35 // pred_fallthru
          _
      $region36: #{tpu_custom_call.1} parent=5 // pred_fallthru
        _
      %p544 = scmp.le.s32.totalorder 2, %s17
      // Predicated region
      $region61: #{tpu_custom_call.1} parent=5 // pred_check
        %p545 = pneg %p544
      $region62: #{tpu_custom_call.1} parent=5 // pred_check_branch
        %547 = sbr.rel (%p545) target = $region64
      $region63: #{tpu_custom_call.1} parent=5 // pred_region
        %s548 = ssub.s32 %s17, 2
        // Predicated region
        $region65: #{tpu_custom_call.1} parent=63 // pred_check
          %p549 = pneg %p154
        $region66: #{tpu_custom_call.1} parent=63 // pred_check_branch
          %551 = sbr.rel (%p549) target = $region68
        $region67: #{tpu_custom_call.1} parent=63 // pred_region
          %s552 = sand.u32 %s139, 1
          %s553 = scalar_lea.sflag [#allocation5], %s552
          %s554 = sand.u32 %s139, 1
          %s555 = smul.addr %s554, 2
          %s556 = scalar_lea.vmem [#allocation9], %s555
          %557 = dma.done %s553, 32
        $region68: #{tpu_custom_call.1} parent=63 // pred_fallthru
          _
      $region64: #{tpu_custom_call.1} parent=5 // pred_fallthru
        _
    $region6: #{tpu_custom_call.1} parent=1 // loop_footer
      %s21 = sadd.s32 1, %s17
    $region7: #{tpu_custom_call.1} parent=1 // loop_footer_branch
      %16 = sbr.rel target = $region3
    $region8: #{tpu_custom_call.1} parent=1 // loop_exit
      _
    %558 = vsyncpa [#allocation4], 1
    %s559 = scalar_lea.sflag [#allocation4], 1
    %560 = vsyncpa %s559, 1
    %561 = vsyncpa [#allocation7], 1
    %562 = vsyncpa [#allocation5], 1
    %s563 = scalar_lea.sflag [#allocation5], 1
    %564 = vsyncpa %s563, 1

</llo_original>
